<compile_context>
chip_gen: v7x
topology: tpu7x:2x2x1
jax: 0.10.0
libtpu: 0.0.40
codegen_flags: <defaults>
</compile_context>

<pallas_src>
import functools

import jax
import jax.numpy as jnp
from jax.experimental import pallas as pl
from jax.experimental.pallas import tpu as pltpu


def _round_up(x: int, m: int) -> int:
    return ((x + m - 1) // m) * m


def _bc_policy_kernel(x_ref, w1_ref, b1_ref, w2_ref, b2_ref, w3_ref, b3_ref,
                      o_ref, *, valid_out: int):
    """Fused 3-layer MLP + masked softmax for one batch tile (f32 throughout)."""
    x = x_ref[...]  # [bt, d_in] f32

    # Layer 1: Linear + ReLU  (lane-padded hidden width)
    h1 = jnp.dot(x, w1_ref[...], preferred_element_type=jnp.float32)
    h1 = jnp.maximum(h1 + b1_ref[...], 0.0)

    # Layer 2: Linear + ReLU
    h2 = jnp.dot(h1, w2_ref[...], preferred_element_type=jnp.float32)
    h2 = jnp.maximum(h2 + b2_ref[...], 0.0)

    # Layer 3: Linear
    logits = jnp.dot(h2, w3_ref[...], preferred_element_type=jnp.float32)
    logits = logits + b3_ref[...]

    # Mask padded output lanes so the softmax only spans the real d_out classes.
    lane = jax.lax.broadcasted_iota(jnp.int32, logits.shape, 1)
    logits = jnp.where(lane < valid_out, logits, -jnp.inf)

    # Numerically stable softmax; one exact reciprocal per row, then multiply.
    m = jnp.max(logits, axis=-1, keepdims=True)
    e = jnp.exp(logits - m)                      # padded lanes -> exp(-inf) = 0
    denom = jnp.sum(e, axis=-1, keepdims=True)
    probs = e * pl.reciprocal(denom)

    # Narrow HBM store: only the first d_out lanes ever leave VMEM.
    o_ref[...] = probs[:, :valid_out].astype(o_ref.dtype)


def prepare_params(params):
    """One-time lane-padding of weights/biases (call outside the hot loop).

    Hidden and output feature dims are zero-padded to multiples of 128 so
    ReLU / bias-add / softmax run on full 128-lane vregs in-kernel. Zero
    weight rows/cols contribute nothing and padded logit lanes are masked
    to -inf in the kernel, so semantics are unchanged.
    """
    w1, b1 = params["w1"], params["b1"]
    w2, b2 = params["w2"], params["b2"]
    w3, b3 = params["w3"], params["b3"]

    h1, h2, d_out = w1.shape[1], w2.shape[1], w3.shape[1]
    H1, H2, DO = _round_up(h1, 128), _round_up(h2, 128), _round_up(d_out, 128)

    padded = {
        "w1": jnp.pad(w1, ((0, 0), (0, H1 - h1))),
        "b1": jnp.pad(b1, ((0, 0), (0, H1 - h1))),
        "w2": jnp.pad(w2, ((0, H1 - h1), (0, H2 - h2))),
        "b2": jnp.pad(b2, ((0, 0), (0, H2 - h2))),
        "w3": jnp.pad(w3, ((0, H2 - h2), (0, DO - d_out))),
        "b3": jnp.pad(b3, ((0, 0), (0, DO - d_out))),
    }
    return padded, d_out


@functools.partial(jax.jit, static_argnames=("d_out", "max_batch_tile"))
def bc_policy_forward(x, padded_params, *, d_out, max_batch_tile=2048):
    """Run the BCPolicyNet forward pass with a Pallas kernel.

    x:             [B, d_in] float32 (any B; no wrapper-side padding)
    padded_params: output of prepare_params()
    d_out:         true number of action classes (static)
    """
    w1p, b1p = padded_params["w1"], padded_params["b1"]
    w2p, b2p = padded_params["w2"], padded_params["b2"]
    w3p, b3p = padded_params["w3"], padded_params["b3"]

    B, d_in = x.shape

    # Batch tile: big tiles amortize per-step overhead; cap so large batches
    # still get >=2 grid steps (lets the "parallel" axis shard across the two
    # TensorCores on v7x). Partial final blocks are masked by Pallas.
    bt = max(8, min(_round_up(max_batch_tile, 8), _round_up(B, 8)))
    if B >= 1024 and pl.cdiv(B, bt) < 2:
        bt = max(512, _round_up(pl.cdiv(B, 2), 8))
    grid = (pl.cdiv(B, bt),)

    kernel = functools.partial(_bc_policy_kernel, valid_out=d_out)

    # Weights/biases: full block, constant index_map -> stay VMEM-resident
    # across grid steps (no per-step re-DMA).
    full2d = lambda arr: pl.BlockSpec(arr.shape, lambda i: (0, 0))

    out = pl.pallas_call(
        kernel,
        out_shape=jax.ShapeDtypeStruct((B, d_out), jnp.float32),
        grid_spec=pltpu.PrefetchScalarGridSpec(
            num_scalar_prefetch=0,
            grid=grid,
            in_specs=[
                pl.BlockSpec((bt, d_in), lambda i: (i, 0)),  # x tile
                full2d(w1p), full2d(b1p),
                full2d(w2p), full2d(b2p),
                full2d(w3p), full2d(b3p),
            ],
            out_specs=pl.BlockSpec((bt, d_out), lambda i: (i, 0)),
        ),
        compiler_params=pltpu.CompilerParams(
            dimension_semantics=("parallel",)),
    )(x, w1p, b1p, w2p, b2p, w3p, b3p)

    return out


def init_params(key, layer_sizes):
    """Deterministic init mimicking torch.nn.Linear (uniform +-1/sqrt(fan_in)).

    Weights stored as [in, out] (transpose of PyTorch's [out, in] layout).
    """
    d_in, h1, h2, d_out = layer_sizes
    keys = jax.random.split(key, 6)

    def linear(kw, kb, fan_in, fan_out):
        bound = 1.0 / jnp.sqrt(jnp.float32(fan_in))
        w = jax.random.uniform(kw, (fan_in, fan_out), jnp.float32, -bound, bound)
        b = jax.random.uniform(kb, (1, fan_out), jnp.float32, -bound, bound)
        return w, b

    w1, b1 = linear(keys[0], keys[1], d_in, h1)
    w2, b2 = linear(keys[2], keys[3], h1, h2)
    w3, b3 = linear(keys[4], keys[5], h2, d_out)
    return {"w1": w1, "b1": b1, "w2": w2, "b2": b2, "w3": w3, "b3": b3}


def reference_forward(x, p):
    h1 = jnp.maximum(x @ p["w1"] + p["b1"], 0.0)
    h2 = jnp.maximum(h1 @ p["w2"] + p["b2"], 0.0)
    logits = h2 @ p["w3"] + p["b3"]
    return jax.nn.softmax(logits, axis=-1)


# TODO(synk): training-side pieces of BCPolicyNet (Adam optimizer, MSELoss,
# save/load) are host-side PyTorch utilities with no kernel equivalent;
# only the forward pass is implemented here.

if __name__ == "__main__":
    # Slime-volleyball BC agent sizes: state dim 12, two hidden layers of 64,
    # 6 discrete actions; small batch of 16 (single grid step).
    layer_sizes = [12, 64, 64, 6]
    batch = 16

    key = jax.random.PRNGKey(0)
    k_params, k_x = jax.random.split(key)
    params = init_params(k_params, layer_sizes)
    padded_params, d_out = prepare_params(params)   # one-time weight padding

    x = jax.random.normal(k_x, (batch, layer_sizes[0]), jnp.float32)
    out = jax.block_until_ready(bc_policy_forward(x, padded_params, d_out=d_out))

    # Sanity check against pure-JAX reference (same math as the PyTorch module).
    ref = reference_forward(x, params)
    assert out.shape == (batch, d_out)
    assert jnp.allclose(out, ref, atol=1e-5, rtol=1e-5), "mismatch vs reference"
    assert jnp.allclose(jnp.sum(out, axis=-1), 1.0, atol=1e-5), "softmax rows must sum to 1"

    # Non-multiple batch: exercises the masked partial final block (no pad/slice).
    x_odd = jax.random.normal(k_x, (1000, layer_sizes[0]), jnp.float32)
    out_odd = jax.block_until_ready(bc_policy_forward(x_odd, padded_params, d_out=d_out))
    assert jnp.allclose(out_odd, reference_forward(x_odd, params), atol=1e-5, rtol=1e-5)

    # Larger batch: exercises the >=2-grid-step path (megacore sharding on v7x).
    x_big = jax.random.normal(k_x, (1536, layer_sizes[0]), jnp.float32)
    out_big = jax.block_until_ready(bc_policy_forward(x_big, padded_params, d_out=d_out))
    assert jnp.allclose(out_big, reference_forward(x_big, params), atol=1e-5, rtol=1e-5)

    print("KERNEL_OK")
</pallas_src>

<mosaic_0001>
module attributes {stable_mosaic.version = 11 : i64} {
  func.func @_bc_policy_kernel(%arg0: i32, %arg1: memref<16x12xf32, #tpu.memory_space<vmem>>, %arg2: memref<12x128xf32, #tpu.memory_space<vmem>>, %arg3: memref<1x128xf32, #tpu.memory_space<vmem>>, %arg4: memref<128x128xf32, #tpu.memory_space<vmem>>, %arg5: memref<1x128xf32, #tpu.memory_space<vmem>>, %arg6: memref<128x128xf32, #tpu.memory_space<vmem>>, %arg7: memref<1x128xf32, #tpu.memory_space<vmem>>, %arg8: memref<16x6xf32, #tpu.memory_space<vmem>>) attributes {dimension_semantics = [#tpu.dimension_semantics<parallel>], iteration_bounds = array<i64: 1>, scalar_prefetch = 0 : i64, scratch_operands = 0 : i64, tpu.core_type = #tpu.core_type<tc>, window_params = [{transform_indices = @transform_0, window_bounds = array<i64: 16, 12>}, {pipeline_mode = #tpu.pipeline_mode<synchronous>, transform_indices = @transform_1, window_bounds = array<i64: 12, 128>}, {pipeline_mode = #tpu.pipeline_mode<synchronous>, transform_indices = @transform_2, window_bounds = array<i64: 1, 128>}, {pipeline_mode = #tpu.pipeline_mode<synchronous>, transform_indices = @transform_3, window_bounds = array<i64: 128, 128>}, {pipeline_mode = #tpu.pipeline_mode<synchronous>, transform_indices = @transform_4, window_bounds = array<i64: 1, 128>}, {pipeline_mode = #tpu.pipeline_mode<synchronous>, transform_indices = @transform_5, window_bounds = array<i64: 128, 128>}, {pipeline_mode = #tpu.pipeline_mode<synchronous>, transform_indices = @transform_6, window_bounds = array<i64: 1, 128>}, {transform_indices = @transform_7, window_bounds = array<i64: 16, 6>}]} {
    %c0 = arith.constant 0 : index
    %c0_0 = arith.constant 0 : index
    %0 = vector.load %arg1[%c0, %c0_0] : memref<16x12xf32, #tpu.memory_space<vmem>>, vector<16x12xf32>
    %c0_1 = arith.constant 0 : index
    %c0_2 = arith.constant 0 : index
    %1 = vector.load %arg2[%c0_1, %c0_2] : memref<12x128xf32, #tpu.memory_space<vmem>>, vector<12x128xf32>
    %cst = arith.constant dense<0.000000e+00> : vector<16x128xf32>
    %2 = tpu.matmul %0, %1, %cst {dimension_numbers = #tpu.dot_dimension_numbers<[1], [0], [0], [1], [0, 0, 1, 1], [], []>} : vector<16x12xf32>, vector<12x128xf32>, vector<16x128xf32> -> vector<16x128xf32>
    %c0_3 = arith.constant 0 : index
    %c0_4 = arith.constant 0 : index
    %3 = vector.load %arg3[%c0_3, %c0_4] : memref<1x128xf32, #tpu.memory_space<vmem>>, vector<1x128xf32>
    %4 = vector.broadcast %3 : vector<1x128xf32> to vector<16x128xf32>
    %5 = arith.addf %2, %4 : vector<16x128xf32>
    %cst_5 = arith.constant 0.000000e+00 : f32
    %6 = vector.broadcast %cst_5 : f32 to vector<16x128xf32>
    %7 = arith.maximumf %5, %6 : vector<16x128xf32>
    %c0_6 = arith.constant 0 : index
    %c0_7 = arith.constant 0 : index
    %8 = vector.load %arg4[%c0_6, %c0_7] : memref<128x128xf32, #tpu.memory_space<vmem>>, vector<128x128xf32>
    %cst_8 = arith.constant dense<0.000000e+00> : vector<16x128xf32>
    %9 = tpu.matmul %7, %8, %cst_8 {dimension_numbers = #tpu.dot_dimension_numbers<[1], [0], [0], [1], [0, 0, 1, 1], [], []>} : vector<16x128xf32>, vector<128x128xf32>, vector<16x128xf32> -> vector<16x128xf32>
    %c0_9 = arith.constant 0 : index
    %c0_10 = arith.constant 0 : index
    %10 = vector.load %arg5[%c0_9, %c0_10] : memref<1x128xf32, #tpu.memory_space<vmem>>, vector<1x128xf32>
    %11 = vector.broadcast %10 : vector<1x128xf32> to vector<16x128xf32>
    %12 = arith.addf %9, %11 : vector<16x128xf32>
    %cst_11 = arith.constant 0.000000e+00 : f32
    %13 = vector.broadcast %cst_11 : f32 to vector<16x128xf32>
    %14 = arith.maximumf %12, %13 : vector<16x128xf32>
    %c0_12 = arith.constant 0 : index
    %c0_13 = arith.constant 0 : index
    %15 = vector.load %arg6[%c0_12, %c0_13] : memref<128x128xf32, #tpu.memory_space<vmem>>, vector<128x128xf32>
    %cst_14 = arith.constant dense<0.000000e+00> : vector<16x128xf32>
    %16 = tpu.matmul %14, %15, %cst_14 {dimension_numbers = #tpu.dot_dimension_numbers<[1], [0], [0], [1], [0, 0, 1, 1], [], []>} : vector<16x128xf32>, vector<128x128xf32>, vector<16x128xf32> -> vector<16x128xf32>
    %c0_15 = arith.constant 0 : index
    %c0_16 = arith.constant 0 : index
    %17 = vector.load %arg7[%c0_15, %c0_16] : memref<1x128xf32, #tpu.memory_space<vmem>>, vector<1x128xf32>
    %18 = vector.broadcast %17 : vector<1x128xf32> to vector<16x128xf32>
    %19 = arith.addf %16, %18 : vector<16x128xf32>
    %20 = tpu.iota {dimensions = array<i32: 1>} : vector<16x128xi32>
    %c6_i32 = arith.constant 6 : i32
    %21 = vector.broadcast %c6_i32 : i32 to vector<16x128xi32>
    %22 = arith.cmpi slt, %20, %21 : vector<16x128xi32>
    %cst_17 = arith.constant 0xFF800000 : f32
    %23 = vector.broadcast %cst_17 : f32 to vector<16x128xf32>
    %24 = arith.select %22, %19, %23 : vector<16x128xi1>, vector<16x128xf32>
    %cst_18 = arith.constant dense<0xFF800000> : vector<16xf32>
    %25 = vector.multi_reduction <maximumf>, %24, %cst_18 [1] : vector<16x128xf32> to vector<16xf32>
    %26 = vector.shape_cast %25 : vector<16xf32> to vector<16x1xf32>
    %27 = vector.broadcast %26 : vector<16x1xf32> to vector<16x128xf32>
    %28 = arith.subf %24, %27 : vector<16x128xf32>
    %29 = math.exp %28 : vector<16x128xf32>
    %cst_19 = arith.constant dense<0.000000e+00> : vector<16xf32>
    %30 = vector.multi_reduction <add>, %29, %cst_19 [1] : vector<16x128xf32> to vector<16xf32>
    %31 = vector.shape_cast %30 : vector<16xf32> to vector<16x1xf32>
    %32 = tpu.reciprocal %31 : vector<16x1xf32> -> vector<16x1xf32>
    %33 = vector.broadcast %32 : vector<16x1xf32> to vector<16x128xf32>
    %34 = arith.mulf %29, %33 : vector<16x128xf32>
    %35 = vector.extract_strided_slice %34 {offsets = [0, 0], sizes = [16, 6], strides = [1, 1]} : vector<16x128xf32> to vector<16x6xf32>
    %c0_20 = arith.constant 0 : index
    %c0_21 = arith.constant 0 : index
    %36 = vector.load %arg8[%c0_20, %c0_21] : memref<16x6xf32, #tpu.memory_space<vmem>>, vector<16x6xf32>
    tpu.vector_store %arg8[%c0_20, %c0_21], %35 {strides = array<i32>} : memref<16x6xf32, #tpu.memory_space<vmem>>, vector<16x6xf32>,
    return
  }
  func.func @transform_0(%arg0: i32) -> (i32, i32) {
    %c0_i32 = arith.constant 0 : i32
    %c0_i32_0 = arith.constant 0 : i32
    return %arg0, %c0_i32 : i32, i32
  }
  func.func @transform_1(%arg0: i32) -> (i32, i32) {
    %c0_i32 = arith.constant 0 : i32
    %c0_i32_0 = arith.constant 0 : i32
    %c0_i32_1 = arith.constant 0 : i32
    return %c0_i32, %c0_i32_0 : i32, i32
  }
  func.func @transform_2(%arg0: i32) -> (i32, i32) {
    %c0_i32 = arith.constant 0 : i32
    %c0_i32_0 = arith.constant 0 : i32
    %c0_i32_1 = arith.constant 0 : i32
    return %c0_i32, %c0_i32_0 : i32, i32
  }
  func.func @transform_3(%arg0: i32) -> (i32, i32) {
    %c0_i32 = arith.constant 0 : i32
    %c0_i32_0 = arith.constant 0 : i32
    %c0_i32_1 = arith.constant 0 : i32
    return %c0_i32, %c0_i32_0 : i32, i32
  }
  func.func @transform_4(%arg0: i32) -> (i32, i32) {
    %c0_i32 = arith.constant 0 : i32
    %c0_i32_0 = arith.constant 0 : i32
    %c0_i32_1 = arith.constant 0 : i32
    return %c0_i32, %c0_i32_0 : i32, i32
  }
  func.func @transform_5(%arg0: i32) -> (i32, i32) {
    %c0_i32 = arith.constant 0 : i32
    %c0_i32_0 = arith.constant 0 : i32
    %c0_i32_1 = arith.constant 0 : i32
    return %c0_i32, %c0_i32_0 : i32, i32
  }
  func.func @transform_6(%arg0: i32) -> (i32, i32) {
    %c0_i32 = arith.constant 0 : i32
    %c0_i32_0 = arith.constant 0 : i32
    %c0_i32_1 = arith.constant 0 : i32
    return %c0_i32, %c0_i32_0 : i32, i32
  }
  func.func @transform_7(%arg0: i32) -> (i32, i32) {
    %c0_i32 = arith.constant 0 : i32
    %c0_i32_0 = arith.constant 0 : i32
    return %arg0, %c0_i32 : i32, i32
  }
}

</mosaic_0001>

<llo_original>
// kernel: bc_policy_forward.1
$region0: #{bc_policy_forward.1}
  #allocation0 [shape = 'u32[]', space=smem, size = 0x4, offset = 0x4, fixed_abs, tag = 'smem constant byte address 0x4 - core index']
  #allocation1 [shape = 'u32[144,128]{1,0:T(1,128)}', space=vmem, size = 0x12000, scoped, tag = 'internal scratch']
  %s0 = inlined_call_operand.hbm [shape: f32[16,12], index: 0, kind: input, shape index: {}]
  %s1 = inlined_call_operand.hbm [shape: f32[12,128], index: 1, kind: input, shape index: {}]
  %s2 = inlined_call_operand.vmem [shape: f32[1,128], index: 2, kind: input, shape index: {}]
  %s3 = inlined_call_operand.hbm [shape: f32[128,128], index: 3, kind: input, shape index: {}]
  %s4 = inlined_call_operand.vmem [shape: f32[1,128], index: 4, kind: input, shape index: {}]
  %s5 = inlined_call_operand.hbm [shape: f32[128,128], index: 5, kind: input, shape index: {}]
  %s6 = inlined_call_operand.vmem [shape: f32[1,128], index: 6, kind: input, shape index: {}]
  %s7 = inlined_call_operand.vmem [shape: f32[16,6], index: 7, kind: output, shape index: {}]
  %s8 = sld [smem:[#allocation0]]
  $region54: #{bc_policy_forward.1} parent=0
    _
  %s10 = ssub.s32 1, %s8
  %s11 = scalar_select 0, %s10, %s8
  $region1: #{bc_policy_forward.1} parent=0
    #allocation2 [shape = 'u8[8192]{0}', space=vmem, size = 0x2000, scoped, tag = 'input window, operand 0, single buffered']
    #allocation3 [shape = 's32[1]{0}', space=sflag, size = 0x4, scoped, tag = 'scoped memory for bc_policy_forward.1']
    #allocation4 [shape = 'u8[8192]{0}', space=vmem, size = 0x2000, scoped, tag = 'input window, operand 1, single buffered']
    #allocation5 [shape = 's32[1]{0}', space=sflag, size = 0x4, scoped, tag = 'scoped memory for bc_policy_forward.1']
    #allocation6 [shape = 'u8[65536]{0}', space=vmem, size = 0x10000, scoped, tag = 'input window, operand 3, single buffered']
    #allocation7 [shape = 'u8[65536]{0}', space=vmem, size = 0x10000, scoped, tag = 'input window, operand 5, single buffered']
    #allocation8 [shape = 's32[1]{0}', space=sflag, size = 0x4, scoped, tag = 'scoped memory for bc_policy_forward.1']
    %12 = vsyncpa [#allocation3], 0
    %13 = vsyncpa [#allocation5], 0
    %14 = vsyncpa [#allocation8], 0
    // Predicated region
    $region2: #{bc_policy_forward.1} parent=1 // pred_check
      _
    $region3: #{bc_policy_forward.1} parent=1 // pred_check_branch
      %16 = sbr.rel (0) target = $region5
    $region4: #{bc_policy_forward.1} parent=1 // pred_region
      %s18 = ssub.s32 256, 256
      %19 = vsyncadd [#allocation3], %s18
      %s20 = sshll.u32 [#allocation2], 4
      %s21 = int_to_ptr.vmem [resolvable:$true] %s20
      %26 = dma.hbm_to_vmem [thread:$0]  %s0, 256, %s21, [#allocation3], 128, 128, 8
    $region5: #{bc_policy_forward.1} parent=1 // pred_fallthru
      _
    // Predicated region
    $region6: #{bc_policy_forward.1} parent=1 // pred_check
      _
    $region7: #{bc_policy_forward.1} parent=1 // pred_check_branch
      %28 = sbr.rel (0) target = $region9
    $region8: #{bc_policy_forward.1} parent=1 // pred_region
      %s30 = ssub.s32 256, 256
      %31 = vsyncadd [#allocation5], %s30
      %s32 = sshll.u32 [#allocation4], 4
      %s33 = int_to_ptr.vmem [resolvable:$true] %s32
      %38 = dma.hbm_to_vmem [thread:$0]  %s1, 256, %s33, [#allocation5], 128, 128, 8
    $region9: #{bc_policy_forward.1} parent=1 // pred_fallthru
      _
    // Predicated region
    $region10: #{bc_policy_forward.1} parent=1 // pred_check
      _
    $region11: #{bc_policy_forward.1} parent=1 // pred_check_branch
      %40 = sbr.rel (0) target = $region13
    $region12: #{bc_policy_forward.1} parent=1 // pred_region
      _
    $region13: #{bc_policy_forward.1} parent=1 // pred_fallthru
      _
    // Predicated region
    $region14: #{bc_policy_forward.1} parent=1 // pred_check
      _
    $region15: #{bc_policy_forward.1} parent=1 // pred_check_branch
      %42 = sbr.rel (0) target = $region17
    $region16: #{bc_policy_forward.1} parent=1 // pred_region
      %s44 = ssub.s32 2048, 2048
      %45 = vsyncadd [#allocation5], %s44
      %s46 = sshll.u32 [#allocation6], 4
      %s47 = int_to_ptr.vmem [resolvable:$true] %s46
      %52 = dma.hbm_to_vmem [thread:$0]  %s3, 2048, %s47, [#allocation5], 128, 128, 8
    $region17: #{bc_policy_forward.1} parent=1 // pred_fallthru
      _
    // Predicated region
    $region18: #{bc_policy_forward.1} parent=1 // pred_check
      _
    $region19: #{bc_policy_forward.1} parent=1 // pred_check_branch
      %54 = sbr.rel (0) target = $region21
    $region20: #{bc_policy_forward.1} parent=1 // pred_region
      _
    $region21: #{bc_policy_forward.1} parent=1 // pred_fallthru
      _
    // Predicated region
    $region22: #{bc_policy_forward.1} parent=1 // pred_check
      _
    $region23: #{bc_policy_forward.1} parent=1 // pred_check_branch
      %56 = sbr.rel (0) target = $region25
    $region24: #{bc_policy_forward.1} parent=1 // pred_region
      %s58 = ssub.s32 2048, 2048
      %59 = vsyncadd [#allocation8], %s58
      %s60 = sshll.u32 [#allocation7], 4
      %s61 = int_to_ptr.vmem [resolvable:$true] %s60
      %66 = dma.hbm_to_vmem [thread:$0]  %s5, 2048, %s61, [#allocation8], 128, 128, 8
    $region25: #{bc_policy_forward.1} parent=1 // pred_fallthru
      _
    // Predicated region
    $region26: #{bc_policy_forward.1} parent=1 // pred_check
      _
    $region27: #{bc_policy_forward.1} parent=1 // pred_check_branch
      %68 = sbr.rel (0) target = $region29
    $region28: #{bc_policy_forward.1} parent=1 // pred_region
      _
    $region29: #{bc_policy_forward.1} parent=1 // pred_fallthru
      _
    // Predicated region
    $region30: #{bc_policy_forward.1} parent=1 // pred_check
      _
    $region31: #{bc_policy_forward.1} parent=1 // pred_check_branch
      %70 = sbr.rel (0) target = $region33
    $region32: #{bc_policy_forward.1} parent=1 // pred_region
      %71 = dma.done [#allocation3], 256
    $region33: #{bc_policy_forward.1} parent=1 // pred_fallthru
      _
    // Predicated region
    $region34: #{bc_policy_forward.1} parent=1 // pred_check
      _
    $region35: #{bc_policy_forward.1} parent=1 // pred_check_branch
      %73 = sbr.rel (0) target = $region37
    $region36: #{bc_policy_forward.1} parent=1 // pred_region
      %74 = dma.done [#allocation5], 256
    $region37: #{bc_policy_forward.1} parent=1 // pred_fallthru
      _
    // Predicated region
    $region38: #{bc_policy_forward.1} parent=1 // pred_check
      _
    $region39: #{bc_policy_forward.1} parent=1 // pred_check_branch
      %76 = sbr.rel (0) target = $region41
    $region40: #{bc_policy_forward.1} parent=1 // pred_region
      %77 = dma.done [#allocation5], 2048
    $region41: #{bc_policy_forward.1} parent=1 // pred_fallthru
      _
    // Predicated region
    $region42: #{bc_policy_forward.1} parent=1 // pred_check
      _
    $region43: #{bc_policy_forward.1} parent=1 // pred_check_branch
      %79 = sbr.rel (0) target = $region45
    $region44: #{bc_policy_forward.1} parent=1 // pred_region
      %80 = dma.done [#allocation8], 2048
    $region45: #{bc_policy_forward.1} parent=1 // pred_fallthru
      _
    %v81 = vld [vmem:[#allocation2] sm:$0xff]
    %v82 = vld [vmem:[#allocation2 + $0x8] sm:$0xff]
    %v83 = vld [vmem:[#allocation4] sm:$0xff]
    %v84 = vld [vmem:[#allocation4 + $0x8] sm:$0xf]
    %v85 = vld [vmem:[%s2] sm:$0x1]
    %v87 = vlaneseq
    %v88 = vshrl.u32 %v87, 7
    %v89 = vsub.s32 0, %v88
    %v90 = vrot.slane %v85, %v89
    %vm92 = vcmask 97280
    %v94 = vsel %vm92, %v81, 0
    %v97 = vsel %vm92, %v82, 0
    %vm99 = vcmask 1043456
    %v101 = vsel %vm99, %v84, 0
    %103 = vmatprep.subr.mxu0 0.0
    %104 = vmatpush1.msra.mxu0 %v83
    %105 = vmatprep.subr.mxu0 0.0
    %106 = vmatpush1.msra.mxu0 %v101
    %107 = vmatprep.subr.mxu0 0.0
    %108 = vmatpush1.msra.mxu0 0.0
    %109 = vmatprep.subr.mxu0 0.0
    %110 = vmatpush1.msra.mxu0 0.0
    %111 = vmatprep.subr.mxu0 0.0
    %112 = vmatpush1.msra.mxu0 0.0
    %113 = vmatprep.subr.mxu0 0.0
    %114 = vmatpush1.msra.mxu0 0.0
    %115 = vmatprep.subr.mxu0 0.0
    %116 = vmatpush1.msra.mxu0 0.0
    %117 = vmatprep.subr.mxu0 0.0
    %118 = vmatpush1.msra.mxu0 0.0
    %119 = vmatprep.subr.mxu0 0.0
    %120 = vmatpush1.msra.mxu0 0.0
    %121 = vmatprep.subr.mxu0 0.0
    %122 = vmatpush1.msra.mxu0 0.0
    %123 = vmatprep.subr.mxu0 0.0
    %124 = vmatpush1.msra.mxu0 0.0
    %125 = vmatprep.subr.mxu0 0.0
    %126 = vmatpush1.msra.mxu0 0.0
    %127 = vmatprep.subr.mxu0 0.0
    %128 = vmatpush1.msra.mxu0 0.0
    %129 = vmatprep.subr.mxu0 0.0
    %130 = vmatpush1.msra.mxu0 0.0
    %131 = vmatprep.subr.mxu0 0.0
    %132 = vmatpush1.msra.mxu0 0.0
    %133 = vmatprep.subr.mxu0 0.0
    %134 = vmatpush1.msra.mxu0 0.0
    %135 = vmatprep.subr.mxu0 0.0
    %136 = vmatpush1.msra.mxu0 0.0
    %137 = vmatprep.subr.mxu0 0.0
    %138 = vmatpush1.msra.mxu0 0.0
    %139 = vmatprep.subr.mxu0 0.0
    %140 = vmatpush1.msra.mxu0 0.0
    %141 = vmatprep.subr.mxu0 0.0
    %142 = vmatpush1.msra.mxu0 0.0
    %143 = vmatprep.subr.mxu0 0.0
    %144 = vmatpush1.msra.mxu0 0.0
    %145 = vmatprep.subr.mxu0 0.0
    %146 = vmatpush1.msra.mxu0 0.0
    %147 = vmatprep.subr.mxu0 0.0
    %148 = vmatpush1.msra.mxu0 0.0
    %149 = vmatprep.subr.mxu0 0.0
    %150 = vmatpush1.msra.mxu0 0.0
    %151 = vmatprep.subr.mxu0 0.0
    %152 = vmatpush1.msra.mxu0 0.0
    %153 = vmatprep.subr.mxu0 0.0
    %154 = vmatpush1.msra.mxu0 0.0
    %155 = vmatprep.subr.mxu0 0.0
    %156 = vmatpush1.msra.mxu0 0.0
    %157 = vmatprep.subr.mxu0 0.0
    %158 = vmatpush1.msra.mxu0 0.0
    %159 = vmatprep.subr.mxu0 0.0
    %160 = vmatpush1.msra.mxu0 0.0
    %161 = vmatprep.subr.mxu0 0.0
    %162 = vmatpush1.msra.mxu0 0.0
    %163 = vmatprep.subr.mxu0 0.0
    %164 = vmatpush1.msra.mxu0 0.0
    %165 = vmatprep.subr.mxu0 0.0
    %166 = vmatpush1.msra.mxu0 0.0
    %167 = vmatprep.mubr.f32.mxu0 0.0
    %168 = vmatmul.mubr.f32.gmra.mrb[0].mxu0 %v94
    %v169 = vpop.f32.mrb[0].mxu0
    %v170 = vadd.f32 %v90, %v169
    %v171 = vpop.f32.mrb[0].mxu0
    %172 = vmatprep.mubr.f32.mxu0 0.0
    %173 = vmatmul.mubr.f32.gmra.mrb[0].mxu0 %v97
    %v174 = vpop.f32.mrb[0].mxu0
    %v175 = vadd.f32 %v90, %v174
    %v176 = vpop.f32.mrb[0].mxu0
    %177 = vdwg.mxu0
    %v178 = vmax.f32 %v170, 0.0
    %v179 = vmax.f32 %v175, 0.0
    %v180 = vld [vmem:[#allocation6] sm:$0xff]
    %v181 = vld [vmem:[#allocation6 + $0x8] sm:$0xff]
    %v182 = vld [vmem:[#allocation6 + $0x10] sm:$0xff]
    %v183 = vld [vmem:[#allocation6 + $0x18] sm:$0xff]
    %v184 = vld [vmem:[#allocation6 + $0x20] sm:$0xff]
    %v185 = vld [vmem:[#allocation6 + $0x28] sm:$0xff]
    %v186 = vld [vmem:[#allocation6 + $0x30] sm:$0xff]
    %v187 = vld [vmem:[#allocation6 + $0x38] sm:$0xff]
    %v188 = vld [vmem:[#allocation6 + $0x40] sm:$0xff]
    %v189 = vld [vmem:[#allocation6 + $0x48] sm:$0xff]
    %v190 = vld [vmem:[#allocation6 + $0x50] sm:$0xff]
    %v191 = vld [vmem:[#allocation6 + $0x58] sm:$0xff]
    %v192 = vld [vmem:[#allocation6 + $0x60] sm:$0xff]
    %v193 = vld [vmem:[#allocation6 + $0x68] sm:$0xff]
    %v194 = vld [vmem:[#allocation6 + $0x70] sm:$0xff]
    %v195 = vld [vmem:[#allocation6 + $0x78] sm:$0xff]
    %v196 = vld [vmem:[%s4] sm:$0x1]
    %v198 = vlaneseq
    %v199 = vshrl.u32 %v198, 7
    %v200 = vsub.s32 0, %v199
    %v201 = vrot.slane %v196, %v200
    %203 = vmatprep.subr.mxu0 0.0
    %204 = vmatpush1.msra.mxu0 %v180
    %205 = vmatprep.subr.mxu0 0.0
    %206 = vmatpush1.msra.mxu0 %v181
    %207 = vmatprep.subr.mxu0 0.0
    %208 = vmatpush1.msra.mxu0 %v182
    %209 = vmatprep.subr.mxu0 0.0
    %210 = vmatpush1.msra.mxu0 %v183
    %211 = vmatprep.subr.mxu0 0.0
    %212 = vmatpush1.msra.mxu0 %v184
    %213 = vmatprep.subr.mxu0 0.0
    %214 = vmatpush1.msra.mxu0 %v185
    %215 = vmatprep.subr.mxu0 0.0
    %216 = vmatpush1.msra.mxu0 %v186
    %217 = vmatprep.subr.mxu0 0.0
    %218 = vmatpush1.msra.mxu0 %v187
    %219 = vmatprep.subr.mxu0 0.0
    %220 = vmatpush1.msra.mxu0 %v188
    %221 = vmatprep.subr.mxu0 0.0
    %222 = vmatpush1.msra.mxu0 %v189
    %223 = vmatprep.subr.mxu0 0.0
    %224 = vmatpush1.msra.mxu0 %v190
    %225 = vmatprep.subr.mxu0 0.0
    %226 = vmatpush1.msra.mxu0 %v191
    %227 = vmatprep.subr.mxu0 0.0
    %228 = vmatpush1.msra.mxu0 %v192
    %229 = vmatprep.subr.mxu0 0.0
    %230 = vmatpush1.msra.mxu0 %v193
    %231 = vmatprep.subr.mxu0 0.0
    %232 = vmatpush1.msra.mxu0 %v194
    %233 = vmatprep.subr.mxu0 0.0
    %234 = vmatpush1.msra.mxu0 %v195
    %235 = vmatprep.subr.mxu0 0.0
    %236 = vmatpush1.msra.mxu0 0.0
    %237 = vmatprep.subr.mxu0 0.0
    %238 = vmatpush1.msra.mxu0 0.0
    %239 = vmatprep.subr.mxu0 0.0
    %240 = vmatpush1.msra.mxu0 0.0
    %241 = vmatprep.subr.mxu0 0.0
    %242 = vmatpush1.msra.mxu0 0.0
    %243 = vmatprep.subr.mxu0 0.0
    %244 = vmatpush1.msra.mxu0 0.0
    %245 = vmatprep.subr.mxu0 0.0
    %246 = vmatpush1.msra.mxu0 0.0
    %247 = vmatprep.subr.mxu0 0.0
    %248 = vmatpush1.msra.mxu0 0.0
    %249 = vmatprep.subr.mxu0 0.0
    %250 = vmatpush1.msra.mxu0 0.0
    %251 = vmatprep.subr.mxu0 0.0
    %252 = vmatpush1.msra.mxu0 0.0
    %253 = vmatprep.subr.mxu0 0.0
    %254 = vmatpush1.msra.mxu0 0.0
    %255 = vmatprep.subr.mxu0 0.0
    %256 = vmatpush1.msra.mxu0 0.0
    %257 = vmatprep.subr.mxu0 0.0
    %258 = vmatpush1.msra.mxu0 0.0
    %259 = vmatprep.subr.mxu0 0.0
    %260 = vmatpush1.msra.mxu0 0.0
    %261 = vmatprep.subr.mxu0 0.0
    %262 = vmatpush1.msra.mxu0 0.0
    %263 = vmatprep.subr.mxu0 0.0
    %264 = vmatpush1.msra.mxu0 0.0
    %265 = vmatprep.subr.mxu0 0.0
    %266 = vmatpush1.msra.mxu0 0.0
    %267 = vmatprep.mubr.f32.mxu0 0.0
    %268 = vmatmul.mubr.f32.gmra.mrb[0].mxu0 %v178
    %v269 = vpop.f32.mrb[0].mxu0
    %v270 = vadd.f32 %v201, %v269
    %v271 = vpop.f32.mrb[0].mxu0
    %272 = vmatprep.mubr.f32.mxu0 0.0
    %273 = vmatmul.mubr.f32.gmra.mrb[0].mxu0 %v179
    %v274 = vpop.f32.mrb[0].mxu0
    %v275 = vadd.f32 %v201, %v274
    %v276 = vpop.f32.mrb[0].mxu0
    %277 = vdwg.mxu0
    %v278 = vmax.f32 %v270, 0.0
    %v279 = vmax.f32 %v275, 0.0
    %v280 = vld [vmem:[#allocation7] sm:$0xff]
    %v281 = vld [vmem:[#allocation7 + $0x8] sm:$0xff]
    %v282 = vld [vmem:[#allocation7 + $0x10] sm:$0xff]
    %v283 = vld [vmem:[#allocation7 + $0x18] sm:$0xff]
    %v284 = vld [vmem:[#allocation7 + $0x20] sm:$0xff]
    %v285 = vld [vmem:[#allocation7 + $0x28] sm:$0xff]
    %v286 = vld [vmem:[#allocation7 + $0x30] sm:$0xff]
    %v287 = vld [vmem:[#allocation7 + $0x38] sm:$0xff]
    %v288 = vld [vmem:[#allocation7 + $0x40] sm:$0xff]
    %v289 = vld [vmem:[#allocation7 + $0x48] sm:$0xff]
    %v290 = vld [vmem:[#allocation7 + $0x50] sm:$0xff]
    %v291 = vld [vmem:[#allocation7 + $0x58] sm:$0xff]
    %v292 = vld [vmem:[#allocation7 + $0x60] sm:$0xff]
    %v293 = vld [vmem:[#allocation7 + $0x68] sm:$0xff]
    %v294 = vld [vmem:[#allocation7 + $0x70] sm:$0xff]
    %v295 = vld [vmem:[#allocation7 + $0x78] sm:$0xff]
    %v296 = vld [vmem:[%s6] sm:$0x1]
    %v298 = vlaneseq
    %v299 = vshrl.u32 %v298, 7
    %v300 = vsub.s32 0, %v299
    %v301 = vrot.slane %v296, %v300
    %303 = vmatprep.subr.mxu0 0.0
    %304 = vmatpush1.msra.mxu0 %v280
    %305 = vmatprep.subr.mxu0 0.0
    %306 = vmatpush1.msra.mxu0 %v281
    %307 = vmatprep.subr.mxu0 0.0
    %308 = vmatpush1.msra.mxu0 %v282
    %309 = vmatprep.subr.mxu0 0.0
    %310 = vmatpush1.msra.mxu0 %v283
    %311 = vmatprep.subr.mxu0 0.0
    %312 = vmatpush1.msra.mxu0 %v284
    %313 = vmatprep.subr.mxu0 0.0
    %314 = vmatpush1.msra.mxu0 %v285
    %315 = vmatprep.subr.mxu0 0.0
    %316 = vmatpush1.msra.mxu0 %v286
    %317 = vmatprep.subr.mxu0 0.0
    %318 = vmatpush1.msra.mxu0 %v287
    %319 = vmatprep.subr.mxu0 0.0
    %320 = vmatpush1.msra.mxu0 %v288
    %321 = vmatprep.subr.mxu0 0.0
    %322 = vmatpush1.msra.mxu0 %v289
    %323 = vmatprep.subr.mxu0 0.0
    %324 = vmatpush1.msra.mxu0 %v290
    %325 = vmatprep.subr.mxu0 0.0
    %326 = vmatpush1.msra.mxu0 %v291
    %327 = vmatprep.subr.mxu0 0.0
    %328 = vmatpush1.msra.mxu0 %v292
    %329 = vmatprep.subr.mxu0 0.0
    %330 = vmatpush1.msra.mxu0 %v293
    %331 = vmatprep.subr.mxu0 0.0
    %332 = vmatpush1.msra.mxu0 %v294
    %333 = vmatprep.subr.mxu0 0.0
    %334 = vmatpush1.msra.mxu0 %v295
    %335 = vmatprep.subr.mxu0 0.0
    %336 = vmatpush1.msra.mxu0 0.0
    %337 = vmatprep.subr.mxu0 0.0
    %338 = vmatpush1.msra.mxu0 0.0
    %339 = vmatprep.subr.mxu0 0.0
    %340 = vmatpush1.msra.mxu0 0.0
    %341 = vmatprep.subr.mxu0 0.0
    %342 = vmatpush1.msra.mxu0 0.0
    %343 = vmatprep.subr.mxu0 0.0
    %344 = vmatpush1.msra.mxu0 0.0
    %345 = vmatprep.subr.mxu0 0.0
    %346 = vmatpush1.msra.mxu0 0.0
    %347 = vmatprep.subr.mxu0 0.0
    %348 = vmatpush1.msra.mxu0 0.0
    %349 = vmatprep.subr.mxu0 0.0
    %350 = vmatpush1.msra.mxu0 0.0
    %351 = vmatprep.subr.mxu0 0.0
    %352 = vmatpush1.msra.mxu0 0.0
    %353 = vmatprep.subr.mxu0 0.0
    %354 = vmatpush1.msra.mxu0 0.0
    %355 = vmatprep.subr.mxu0 0.0
    %356 = vmatpush1.msra.mxu0 0.0
    %357 = vmatprep.subr.mxu0 0.0
    %358 = vmatpush1.msra.mxu0 0.0
    %359 = vmatprep.subr.mxu0 0.0
    %360 = vmatpush1.msra.mxu0 0.0
    %361 = vmatprep.subr.mxu0 0.0
    %362 = vmatpush1.msra.mxu0 0.0
    %363 = vmatprep.subr.mxu0 0.0
    %364 = vmatpush1.msra.mxu0 0.0
    %365 = vmatprep.subr.mxu0 0.0
    %366 = vmatpush1.msra.mxu0 0.0
    %367 = vmatprep.mubr.f32.mxu0 0.0
    %368 = vmatmul.mubr.f32.gmra.mrb[0].mxu0 %v278
    %v369 = vpop.f32.mrb[0].mxu0
    %v370 = vadd.f32 %v301, %v369
    %v371 = vpop.f32.mrb[0].mxu0
    %372 = vmatprep.mubr.f32.mxu0 0.0
    %373 = vmatmul.mubr.f32.gmra.mrb[0].mxu0 %v279
    %v374 = vpop.f32.mrb[0].mxu0
    %v375 = vadd.f32 %v301, %v374
    %v376 = vpop.f32.mrb[0].mxu0
    %377 = vdwg.mxu0
    %v378 = vlaneseq
    %v379 = vand.u32 %v378, 127
    %vm380 = vcmp.lt.s32.totalorder %v379, 6
    %v381 = vsel %vm380, %v370, -inf
    %v382 = vsel %vm380, %v375, -inf
    %383 = vmax.xlane.f32.xlu0 %v381
    %v384 = vpop.xlane.xlu0 %383
    %385 = vmax.xlane.f32.xlu0 %v382
    %v386 = vpop.xlane.xlu0 %385
    %v387 = vsub.f32 %v381, %v384
    %v388 = vsub.f32 %v382, %v386
    %v389 = vmul.f32 %v387, 1.442695
    %v390 = vpow.pop %v389
    %v391 = vmul.f32 %v388, 1.442695
    %v392 = vpow.pop %v391
    %393 = vadd.xlane.f32.xlu0 %v390
    %v394 = vpop.xlane.xlu0 %393
    %395 = vadd.xlane.f32.xlu0 %v392
    %v396 = vpop.xlane.xlu0 %395
    %v397 = vrcp.pop %v394
    %v398 = vrcp.pop %v396
    %v399 = vmul.f32 %v390, %v397
    %v400 = vmul.f32 %v392, %v398
    %vm401 = vcmask 48128
    %402 = vst.msk [vmem:[%s7] sm:$0xff] %vm401, %v399
    %403 = vst.msk [vmem:[%s7 + $0x8] sm:$0xff] %vm401, %v400
    // Predicated region
    $region46: #{bc_policy_forward.1} parent=1 // pred_check
      _
    $region47: #{bc_policy_forward.1} parent=1 // pred_check_branch
      %405 = sbr.rel (0) target = $region49
    $region48: #{bc_policy_forward.1} parent=1 // pred_region
      _
    $region49: #{bc_policy_forward.1} parent=1 // pred_fallthru
      _
    // Predicated region
    $region50: #{bc_policy_forward.1} parent=1 // pred_check
      _
    $region51: #{bc_policy_forward.1} parent=1 // pred_check_branch
      %407 = sbr.rel (0) target = $region53
    $region52: #{bc_policy_forward.1} parent=1 // pred_region
      _
    $region53: #{bc_policy_forward.1} parent=1 // pred_fallthru
      _
    %408 = vsyncpa [#allocation3], 1
    %409 = vsyncpa [#allocation5], 1
    %410 = vsyncpa [#allocation8], 1

</llo_original>
